<compile_context>
chip_gen: v5e
topology: v5e:2x2
jax: 0.10.0
libtpu: 0.0.40
codegen_flags: <defaults>
</compile_context>

<pallas_src>
import math

import jax
import jax.numpy as jnp
from jax import lax
from jax.experimental import pallas as pl
from jax.experimental.pallas import tpu as pltpu


def _round_up(x, m):
    return (x + m - 1) // m * m


def _pixelwise_embedding_kernel(x_ref, xh_ref, dw_ref, wct_ref, b_ref,
                                out_ref, xs_ref):
    # x_ref  : (1, Cin, TH, W)     current row tile (auto-pipelined)
    # xh_ref : (1, 1, 2*Cin, W)    [top halo rows ; bottom halo rows] for this
    #                              tile (already zero at the image border)
    # dw_ref : (Cin, 1, 9)         depthwise taps, dw_ref[c, 0, 3*ky + kx]
    # wct_ref: (C2, Cin)           folded 1x1 weights (pw @ w1)^T
    # b_ref  : (C2, 1)             bias
    # out_ref: (1, C2, TH*W)       output tile, spatial flattened into lanes
    # xs_ref : (Cin, TH+2, W+2)    VMEM scratch: zero-padded slab (rebuilt each step)
    cin, thp2, wp2 = xs_ref.shape
    th, w = thp2 - 2, wp2 - 2
    c2 = out_ref.shape[1]

    # ---- assemble the zero-padded halo slab (every element rewritten each
    #      step, so the kernel carries no state across grid iterations) ------
    zcol = jnp.zeros((cin, thp2, 1), xs_ref.dtype)
    xs_ref[:, :, 0:1] = zcol                                   # left border
    xs_ref[:, :, w + 1:w + 2] = zcol                           # right border
    top = xh_ref[0, 0, 0:cin, :].reshape(cin, 1, w)
    bot = xh_ref[0, 0, cin:2 * cin, :].reshape(cin, 1, w)
    xs_ref[:, 0:1, 1:w + 1] = top                              # top halo row
    xs_ref[:, th + 1:th + 2, 1:w + 1] = bot                    # bottom halo row
    xs_ref[:, 1:th + 1, 1:w + 1] = x_ref[0]                    # interior rows

    xs = xs_ref[...]                    # (Cin, TH+2, W+2)
    dwt = dw_ref[...]                   # (Cin, 1, 9)

    # ---- depthwise 3x3: 9 shifted VPU FMAs (shifts are cheap XLU work) -----
    y = dwt[:, :, 0:1] * xs[:, 0:th, 0:w]
    for tap in range(1, 9):
        dy, dx = tap // 3, tap % 3
        y = y + dwt[:, :, tap:tap + 1] * xs[:, dy:dy + th, dx:dx + w]

    # ---- both bias-free 1x1 convs folded into ONE MXU matmul over Cin ------
    out = jnp.dot(wct_ref[...], y.reshape(cin, th * w),
                  preferred_element_type=jnp.float32)          # (C2, TH*W)
    out = out + b_ref[...]

    # Lane-dense store: TH*W is a multiple of 128 -> unmasked vst, and the
    # layout is already NCHW (no epilogue transpose / channel padding).
    out_ref[...] = out.reshape(1, c2, th * w).astype(out_ref.dtype)


def pixelwise_embedding(x_nchw, dw, pw, w1, b, *, tile_h=None):
    """Forward pass of PixelwiseEmbedding.

    x_nchw : (N, Cin, H, W) float32
    dw     : (3, 3, Cin)  depthwise weights (torch separable.conv1.weight[c,0,ky,kx] -> dw[ky,kx,c])
    pw     : (Cin, C1)    pointwise weights (torch separable.pointwise.weight[d,c,0,0] -> pw[c,d])
    w1     : (C1, C2)     final 1x1 weights (torch conv1.weight[d,c,0,0] -> w1[c,d])
    b      : (C2,)        final 1x1 bias
    returns (N, C2, H, W)
    """
    n, cin, h, w = x_nchw.shape
    c2 = w1.shape[1]
    dtype = x_nchw.dtype

    # ---- row-tile size ------------------------------------------------------
    # TH is a multiple of `step` so that (a) TH % 8 == 0 (sublane rule on the
    # input block) and (b) TH*W % 128 == 0 (unmasked lane-dense output stores).
    step = max(8, 128 // math.gcd(w, 128))
    if tile_h is None:
        # Grow until the matmul N dim (TH*W lanes) is comfortably large while
        # the slab stays a small slice of VMEM (re-derived per call, safe for
        # v7x's 64 MiB as well as v5e/v6e's 128 MiB).
        tile_h = step
        slab_bytes = lambda t: cin * (t + 2) * _round_up(w + 2, 128) * 4
        while (tile_h * w < 2048 and tile_h < h
               and slab_bytes(tile_h * 2) <= 4 * 2 ** 20):
            tile_h *= 2
    else:
        tile_h = _round_up(max(1, int(tile_h)), step)

    h_pad = _round_up(h, tile_h)
    num_h = h_pad // tile_h

    x = x_nchw
    if h_pad != h:
        # Ragged last tile: zero-pad H (matches the conv's zero padding for the
        # last real row; extra output rows are sliced off afterwards).
        x = jnp.pad(x, ((0, 0), (0, 0), (0, h_pad - h), (0, 0)))

    # ---- per-tile vertical halo rows (instead of a padded HBM copy of x) ----
    #   xh[n, i, 0:cin , :] = x row (i*TH - 1)   (zeros for i == 0)
    #   xh[n, i, cin:  , :] = x row ((i+1)*TH)   (zeros for i == num_h - 1)
    zrow = jnp.zeros((n, cin, 1, w), dtype)
    if num_h > 1:
        tops = jnp.concatenate(
            [zrow, x[:, :, tile_h - 1:h_pad - 1:tile_h, :]], axis=2)
        bots = jnp.concatenate(
            [x[:, :, tile_h::tile_h, :], zrow], axis=2)
    else:
        tops, bots = zrow, zrow
    xh = jnp.concatenate([tops, bots], axis=1)            # (N, 2*Cin, num_h, W)
    xh = jnp.transpose(xh, (0, 2, 1, 3))                   # (N, num_h, 2*Cin, W)

    # ---- fold the two bias-free 1x1 convs into one (C2, Cin) matrix ---------
    # Exact: there is no nonlinearity between the convs.
    wct = jnp.dot(pw, w1, precision=lax.Precision.HIGHEST).T.astype(dtype)  # (C2, Cin)
    dw_k = jnp.transpose(dw.reshape(9, cin)).reshape(cin, 1, 9).astype(dtype)
    b2 = b.reshape(c2, 1).astype(dtype)

    # ---- VMEM budget: re-derived from the chosen blocks, ~2x headroom,
    #      capped well below v7x's 64 MiB physical VMEM ------------------------
    itemb = jnp.dtype(dtype).itemsize
    lane = lambda c: _round_up(c, 128)
    sub = lambda s: _round_up(s, 8)
    blk_in = cin * sub(tile_h) * lane(w) * itemb
    blk_halo = sub(2 * cin) * lane(w) * itemb
    blk_out = sub(c2) * lane(tile_h * w) * itemb
    blk_wgt = (cin * 8 * lane(9) + sub(c2) * lane(cin) + sub(c2) * 128) * itemb
    slab = cin * sub(tile_h + 2) * lane(w + 2) * itemb
    est = (2 * (blk_in + blk_halo + blk_out)   # double-buffered pipeline blocks
           + 2 * blk_wgt                        # resident weights (worst case x2)
           + 2 * slab                           # scratch + loaded slab value
           + blk_in + blk_out)                  # y accumulator + matmul result
    vmem_limit = int(min(max(2 * est, 8 * 2 ** 20), 40 * 2 ** 20))

    out_flat = pl.pallas_call(
        _pixelwise_embedding_kernel,
        out_shape=jax.ShapeDtypeStruct((n, c2, h_pad * w), dtype),
        grid_spec=pltpu.PrefetchScalarGridSpec(
            num_scalar_prefetch=0,
            grid=(n, num_h),
            in_specs=[
                pl.BlockSpec((1, cin, tile_h, w), lambda nn, ii: (nn, 0, ii, 0)),
                pl.BlockSpec((1, 1, 2 * cin, w), lambda nn, ii: (nn, ii, 0, 0)),
                pl.BlockSpec((cin, 1, 9), lambda nn, ii: (0, 0, 0)),   # resident
                pl.BlockSpec((c2, cin), lambda nn, ii: (0, 0)),        # resident
                pl.BlockSpec((c2, 1), lambda nn, ii: (0, 0)),          # resident
            ],
            out_specs=pl.BlockSpec((1, c2, tile_h * w),
                                   lambda nn, ii: (nn, 0, ii)),
            scratch_shapes=[
                pltpu.VMEM((cin, tile_h + 2, w + 2), dtype),
            ],
        ),
        compiler_params=pltpu.CompilerParams(
            # Every grid step is self-contained (the slab scratch is fully
            # rewritten each step), so both axes can be "parallel": v7x
            # megacore can split row tiles even when N == 1, and the pipeline
            # prefetches across batch boundaries automatically.
            dimension_semantics=("parallel", "parallel"),
            vmem_limit_bytes=vmem_limit,
        ),
    )(x, xh, dw_k, wct, b2)

    out = out_flat.reshape(n, c2, h_pad, w)   # free reshape, already NCHW
    if h_pad != h:
        out = out[:, :, :h, :]
    return out


def _reference(x_nchw, dw, pw, w1, b):
    """Pure-JAX reference (lax.conv + einsum) matching the PyTorch module."""
    x = jnp.transpose(x_nchw, (0, 2, 3, 1))                    # NHWC
    cin = x.shape[-1]
    y = lax.conv_general_dilated(
        x, dw.reshape(3, 3, 1, cin),
        window_strides=(1, 1), padding=((1, 1), (1, 1)),
        feature_group_count=cin,
        dimension_numbers=("NHWC", "HWIO", "NHWC"),
        precision=lax.Precision.HIGHEST)
    y = jnp.einsum("nhwc,cd->nhwd", y, pw, precision=lax.Precision.HIGHEST)
    y = jnp.einsum("nhwc,cd->nhwd", y, w1, precision=lax.Precision.HIGHEST) + b
    return jnp.transpose(y, (0, 3, 1, 2))                      # NCHW


if __name__ == "__main__":
    # Small shapes consistent with the module.
    N, Cin, H, W = 2, 4, 16, 16
    C1, C2 = 8, 8

    key = jax.random.PRNGKey(0)
    kx, kdw, kpw, kw1, kb = jax.random.split(key, 5)

    x = jax.random.normal(kx, (N, Cin, H, W), dtype=jnp.float32)
    # Deterministic synthetic parameters (shapes follow the torch module __init__).
    dw = jax.random.normal(kdw, (3, 3, Cin), dtype=jnp.float32) * 0.1
    pw = jax.random.normal(kpw, (Cin, C1), dtype=jnp.float32) * 0.1
    w1 = jax.random.normal(kw1, (C1, C2), dtype=jnp.float32) * 0.1
    b = jax.random.normal(kb, (C2,), dtype=jnp.float32) * 0.1

    ref = jax.block_until_ready(_reference(x, dw, pw, w1, b))

    # Multi-row-tile path: grid = (N, 2), exercises the halo handling.
    out_tiled = jax.block_until_ready(
        pixelwise_embedding(x, dw, pw, w1, b, tile_h=8))
    assert out_tiled.shape == (N, C2, H, W), out_tiled.shape
    assert jnp.allclose(out_tiled, ref, atol=1e-4, rtol=1e-4), \
        float(jnp.max(jnp.abs(out_tiled - ref)))

    # Auto tile size (single row tile for this small H).
    out_auto = jax.block_until_ready(pixelwise_embedding(x, dw, pw, w1, b))
    assert out_auto.shape == (N, C2, H, W), out_auto.shape
    assert jnp.allclose(out_auto, ref, atol=1e-4, rtol=1e-4), \
        float(jnp.max(jnp.abs(out_auto - ref)))

    print("KERNEL_OK")
</pallas_src>

<mosaic_0001>
module attributes {stable_mosaic.version = 11 : i64} {
  func.func @_pixelwise_embedding_kernel(%arg0: i32, %arg1: i32, %arg2: memref<1x4x8x16xf32, #tpu.memory_space<vmem>>, %arg3: memref<1x1x8x16xf32, #tpu.memory_space<vmem>>, %arg4: memref<4x1x9xf32, #tpu.memory_space<vmem>>, %arg5: memref<8x4xf32, #tpu.memory_space<vmem>>, %arg6: memref<8x1xf32, #tpu.memory_space<vmem>>, %arg7: memref<1x8x128xf32, #tpu.memory_space<vmem>>, %arg8: memref<4x10x18xf32, #tpu.memory_space<vmem>>) attributes {dimension_semantics = [#tpu.dimension_semantics<parallel>, #tpu.dimension_semantics<parallel>], iteration_bounds = array<i64: 2, 2>, scalar_prefetch = 0 : i64, scratch_operands = 1 : i64, tpu.core_type = #tpu.core_type<tc>, window_params = [{transform_indices = @transform_0, window_bounds = array<i64: 1, 4, 8, 16>}, {transform_indices = @transform_1, window_bounds = array<i64: 1, 1, 8, 16>}, {pipeline_mode = #tpu.pipeline_mode<synchronous>, transform_indices = @transform_2, window_bounds = array<i64: 4, 1, 9>}, {pipeline_mode = #tpu.pipeline_mode<synchronous>, transform_indices = @transform_3, window_bounds = array<i64: 8, 4>}, {pipeline_mode = #tpu.pipeline_mode<synchronous>, transform_indices = @transform_4, window_bounds = array<i64: 8, 1>}, {transform_indices = @transform_5, window_bounds = array<i64: 1, 8, 128>}]} {
    %cst = arith.constant 0.000000e+00 : f32
    %0 = vector.broadcast %cst : f32 to vector<4x10x1xf32>
    %c0 = arith.constant 0 : index
    %c0_0 = arith.constant 0 : index
    %c0_1 = arith.constant 0 : index
    %1 = vector.load %arg8[%c0, %c0_0, %c0_1] : memref<4x10x18xf32, #tpu.memory_space<vmem>>, vector<4x10x1xf32>
    tpu.vector_store %arg8[%c0, %c0_0, %c0_1], %0 {strides = array<i32>} : memref<4x10x18xf32, #tpu.memory_space<vmem>>, vector<4x10x1xf32>,
    %c0_2 = arith.constant 0 : index
    %c0_3 = arith.constant 0 : index
    %c17 = arith.constant 17 : index
    %2 = vector.load %arg8[%c0_2, %c0_3, %c17] : memref<4x10x18xf32, #tpu.memory_space<vmem>>, vector<4x10x1xf32>
    tpu.vector_store %arg8[%c0_2, %c0_3, %c17], %0 {strides = array<i32>} : memref<4x10x18xf32, #tpu.memory_space<vmem>>, vector<4x10x1xf32>,
    %c0_4 = arith.constant 0 : index
    %c0_5 = arith.constant 0 : index
    %c0_6 = arith.constant 0 : index
    %c0_7 = arith.constant 0 : index
    %3 = vector.load %arg3[%c0_4, %c0_5, %c0_6, %c0_7] : memref<1x1x8x16xf32, #tpu.memory_space<vmem>>, vector<1x1x4x16xf32>
    %4 = vector.shape_cast %3 : vector<1x1x4x16xf32> to vector<4x16xf32>
    %5 = vector.shape_cast %4 : vector<4x16xf32> to vector<4x1x16xf32>
    %c0_8 = arith.constant 0 : index
    %c0_9 = arith.constant 0 : index
    %c4 = arith.constant 4 : index
    %c0_10 = arith.constant 0 : index
    %6 = vector.load %arg3[%c0_8, %c0_9, %c4, %c0_10] : memref<1x1x8x16xf32, #tpu.memory_space<vmem>>, vector<1x1x4x16xf32>
    %7 = vector.shape_cast %6 : vector<1x1x4x16xf32> to vector<4x16xf32>
    %8 = vector.shape_cast %7 : vector<4x16xf32> to vector<4x1x16xf32>
    %c0_11 = arith.constant 0 : index
    %c0_12 = arith.constant 0 : index
    %c1 = arith.constant 1 : index
    %9 = vector.load %arg8[%c0_11, %c0_12, %c1] : memref<4x10x18xf32, #tpu.memory_space<vmem>>, vector<4x1x16xf32>
    tpu.vector_store %arg8[%c0_11, %c0_12, %c1], %5 {strides = array<i32>} : memref<4x10x18xf32, #tpu.memory_space<vmem>>, vector<4x1x16xf32>,
    %c0_13 = arith.constant 0 : index
    %c9 = arith.constant 9 : index
    %c1_14 = arith.constant 1 : index
    %10 = vector.load %arg8[%c0_13, %c9, %c1_14] : memref<4x10x18xf32, #tpu.memory_space<vmem>>, vector<4x1x16xf32>
    tpu.vector_store %arg8[%c0_13, %c9, %c1_14], %8 {strides = array<i32>} : memref<4x10x18xf32, #tpu.memory_space<vmem>>, vector<4x1x16xf32>,
    %c0_15 = arith.constant 0 : index
    %c0_16 = arith.constant 0 : index
    %c0_17 = arith.constant 0 : index
    %c0_18 = arith.constant 0 : index
    %11 = vector.load %arg2[%c0_15, %c0_16, %c0_17, %c0_18] : memref<1x4x8x16xf32, #tpu.memory_space<vmem>>, vector<1x4x8x16xf32>
    %12 = vector.shape_cast %11 : vector<1x4x8x16xf32> to vector<4x8x16xf32>
    %c0_19 = arith.constant 0 : index
    %c1_20 = arith.constant 1 : index
    %c1_21 = arith.constant 1 : index
    %13 = vector.load %arg8[%c0_19, %c1_20, %c1_21] : memref<4x10x18xf32, #tpu.memory_space<vmem>>, vector<4x8x16xf32>
    tpu.vector_store %arg8[%c0_19, %c1_20, %c1_21], %12 {strides = array<i32>} : memref<4x10x18xf32, #tpu.memory_space<vmem>>, vector<4x8x16xf32>,
    %c0_22 = arith.constant 0 : index
    %c0_23 = arith.constant 0 : index
    %c0_24 = arith.constant 0 : index
    %14 = vector.load %arg8[%c0_22, %c0_23, %c0_24] : memref<4x10x18xf32, #tpu.memory_space<vmem>>, vector<4x10x18xf32>
    %c0_25 = arith.constant 0 : index
    %c0_26 = arith.constant 0 : index
    %c0_27 = arith.constant 0 : index
    %15 = vector.load %arg4[%c0_25, %c0_26, %c0_27] : memref<4x1x9xf32, #tpu.memory_space<vmem>>, vector<4x1x9xf32>
    %16 = vector.extract_strided_slice %15 {offsets = [0, 0, 0], sizes = [4, 1, 1], strides = [1, 1, 1]} : vector<4x1x9xf32> to vector<4x1x1xf32>
    %17 = vector.extract_strided_slice %14 {offsets = [0, 0, 0], sizes = [4, 8, 16], strides = [1, 1, 1]} : vector<4x10x18xf32> to vector<4x8x16xf32>
    %18 = vector.broadcast %16 : vector<4x1x1xf32> to vector<4x8x16xf32>
    %19 = arith.mulf %18, %17 : vector<4x8x16xf32>
    %20 = vector.extract_strided_slice %15 {offsets = [0, 0, 1], sizes = [4, 1, 1], strides = [1, 1, 1]} : vector<4x1x9xf32> to vector<4x1x1xf32>
    %21 = vector.extract_strided_slice %14 {offsets = [0, 0, 1], sizes = [4, 8, 16], strides = [1, 1, 1]} : vector<4x10x18xf32> to vector<4x8x16xf32>
    %22 = vector.broadcast %20 : vector<4x1x1xf32> to vector<4x8x16xf32>
    %23 = arith.mulf %22, %21 : vector<4x8x16xf32>
    %24 = arith.addf %19, %23 : vector<4x8x16xf32>
    %25 = vector.extract_strided_slice %15 {offsets = [0, 0, 2], sizes = [4, 1, 1], strides = [1, 1, 1]} : vector<4x1x9xf32> to vector<4x1x1xf32>
    %26 = vector.extract_strided_slice %14 {offsets = [0, 0, 2], sizes = [4, 8, 16], strides = [1, 1, 1]} : vector<4x10x18xf32> to vector<4x8x16xf32>
    %27 = vector.broadcast %25 : vector<4x1x1xf32> to vector<4x8x16xf32>
    %28 = arith.mulf %27, %26 : vector<4x8x16xf32>
    %29 = arith.addf %24, %28 : vector<4x8x16xf32>
    %30 = vector.extract_strided_slice %15 {offsets = [0, 0, 3], sizes = [4, 1, 1], strides = [1, 1, 1]} : vector<4x1x9xf32> to vector<4x1x1xf32>
    %31 = vector.extract_strided_slice %14 {offsets = [0, 1, 0], sizes = [4, 8, 16], strides = [1, 1, 1]} : vector<4x10x18xf32> to vector<4x8x16xf32>
    %32 = vector.broadcast %30 : vector<4x1x1xf32> to vector<4x8x16xf32>
    %33 = arith.mulf %32, %31 : vector<4x8x16xf32>
    %34 = arith.addf %29, %33 : vector<4x8x16xf32>
    %35 = vector.extract_strided_slice %15 {offsets = [0, 0, 4], sizes = [4, 1, 1], strides = [1, 1, 1]} : vector<4x1x9xf32> to vector<4x1x1xf32>
    %36 = vector.extract_strided_slice %14 {offsets = [0, 1, 1], sizes = [4, 8, 16], strides = [1, 1, 1]} : vector<4x10x18xf32> to vector<4x8x16xf32>
    %37 = vector.broadcast %35 : vector<4x1x1xf32> to vector<4x8x16xf32>
    %38 = arith.mulf %37, %36 : vector<4x8x16xf32>
    %39 = arith.addf %34, %38 : vector<4x8x16xf32>
    %40 = vector.extract_strided_slice %15 {offsets = [0, 0, 5], sizes = [4, 1, 1], strides = [1, 1, 1]} : vector<4x1x9xf32> to vector<4x1x1xf32>
    %41 = vector.extract_strided_slice %14 {offsets = [0, 1, 2], sizes = [4, 8, 16], strides = [1, 1, 1]} : vector<4x10x18xf32> to vector<4x8x16xf32>
    %42 = vector.broadcast %40 : vector<4x1x1xf32> to vector<4x8x16xf32>
    %43 = arith.mulf %42, %41 : vector<4x8x16xf32>
    %44 = arith.addf %39, %43 : vector<4x8x16xf32>
    %45 = vector.extract_strided_slice %15 {offsets = [0, 0, 6], sizes = [4, 1, 1], strides = [1, 1, 1]} : vector<4x1x9xf32> to vector<4x1x1xf32>
    %46 = vector.extract_strided_slice %14 {offsets = [0, 2, 0], sizes = [4, 8, 16], strides = [1, 1, 1]} : vector<4x10x18xf32> to vector<4x8x16xf32>
    %47 = vector.broadcast %45 : vector<4x1x1xf32> to vector<4x8x16xf32>
    %48 = arith.mulf %47, %46 : vector<4x8x16xf32>
    %49 = arith.addf %44, %48 : vector<4x8x16xf32>
    %50 = vector.extract_strided_slice %15 {offsets = [0, 0, 7], sizes = [4, 1, 1], strides = [1, 1, 1]} : vector<4x1x9xf32> to vector<4x1x1xf32>
    %51 = vector.extract_strided_slice %14 {offsets = [0, 2, 1], sizes = [4, 8, 16], strides = [1, 1, 1]} : vector<4x10x18xf32> to vector<4x8x16xf32>
    %52 = vector.broadcast %50 : vector<4x1x1xf32> to vector<4x8x16xf32>
    %53 = arith.mulf %52, %51 : vector<4x8x16xf32>
    %54 = arith.addf %49, %53 : vector<4x8x16xf32>
    %55 = vector.extract_strided_slice %15 {offsets = [0, 0, 8], sizes = [4, 1, 1], strides = [1, 1, 1]} : vector<4x1x9xf32> to vector<4x1x1xf32>
    %56 = vector.extract_strided_slice %14 {offsets = [0, 2, 2], sizes = [4, 8, 16], strides = [1, 1, 1]} : vector<4x10x18xf32> to vector<4x8x16xf32>
    %57 = vector.broadcast %55 : vector<4x1x1xf32> to vector<4x8x16xf32>
    %58 = arith.mulf %57, %56 : vector<4x8x16xf32>
    %59 = arith.addf %54, %58 : vector<4x8x16xf32>
    %c0_28 = arith.constant 0 : index
    %c0_29 = arith.constant 0 : index
    %60 = vector.load %arg5[%c0_28, %c0_29] : memref<8x4xf32, #tpu.memory_space<vmem>>, vector<8x4xf32>
    %61 = vector.shape_cast %59 : vector<4x8x16xf32> to vector<4x128xf32>
    %cst_30 = arith.constant dense<0.000000e+00> : vector<8x128xf32>
    %62 = tpu.matmul %60, %61, %cst_30 {dimension_numbers = #tpu.dot_dimension_numbers<[1], [0], [0], [1], [0, 0, 1, 1], [], []>} : vector<8x4xf32>, vector<4x128xf32>, vector<8x128xf32> -> vector<8x128xf32>
    %c0_31 = arith.constant 0 : index
    %c0_32 = arith.constant 0 : index
    %63 = vector.load %arg6[%c0_31, %c0_32] : memref<8x1xf32, #tpu.memory_space<vmem>>, vector<8x1xf32>
    %64 = vector.broadcast %63 : vector<8x1xf32> to vector<8x128xf32>
    %65 = arith.addf %62, %64 : vector<8x128xf32>
    %66 = vector.shape_cast %65 : vector<8x128xf32> to vector<1x8x128xf32>
    %c0_33 = arith.constant 0 : index
    %c0_34 = arith.constant 0 : index
    %c0_35 = arith.constant 0 : index
    %67 = vector.load %arg7[%c0_33, %c0_34, %c0_35] : memref<1x8x128xf32, #tpu.memory_space<vmem>>, vector<1x8x128xf32>
    tpu.vector_store %arg7[%c0_33, %c0_34, %c0_35], %66 {strides = array<i32>} : memref<1x8x128xf32, #tpu.memory_space<vmem>>, vector<1x8x128xf32>,
    return
  }
  func.func @transform_0(%arg0: i32, %arg1: i32) -> (i32, i32, i32, i32) {
    %c0_i32 = arith.constant 0 : i32
    %c0_i32_0 = arith.constant 0 : i32
    %c0_i32_1 = arith.constant 0 : i32
    return %arg0, %c0_i32, %arg1, %c0_i32_0 : i32, i32, i32, i32
  }
  func.func @transform_1(%arg0: i32, %arg1: i32) -> (i32, i32, i32, i32) {
    %c0_i32 = arith.constant 0 : i32
    %c0_i32_0 = arith.constant 0 : i32
    %c0_i32_1 = arith.constant 0 : i32
    return %arg0, %arg1, %c0_i32, %c0_i32_0 : i32, i32, i32, i32
  }
  func.func @transform_2(%arg0: i32, %arg1: i32) -> (i32, i32, i32) {
    %c0_i32 = arith.constant 0 : i32
    %c0_i32_0 = arith.constant 0 : i32
    %c0_i32_1 = arith.constant 0 : i32
    %c0_i32_2 = arith.constant 0 : i32
    return %c0_i32, %c0_i32_0, %c0_i32_1 : i32, i32, i32
  }
  func.func @transform_3(%arg0: i32, %arg1: i32) -> (i32, i32) {
    %c0_i32 = arith.constant 0 : i32
    %c0_i32_0 = arith.constant 0 : i32
    %c0_i32_1 = arith.constant 0 : i32
    return %c0_i32, %c0_i32_0 : i32, i32
  }
  func.func @transform_4(%arg0: i32, %arg1: i32) -> (i32, i32) {
    %c0_i32 = arith.constant 0 : i32
    %c0_i32_0 = arith.constant 0 : i32
    %c0_i32_1 = arith.constant 0 : i32
    return %c0_i32, %c0_i32_0 : i32, i32
  }
  func.func @transform_5(%arg0: i32, %arg1: i32) -> (i32, i32, i32) {
    %c0_i32 = arith.constant 0 : i32
    %c0_i32_0 = arith.constant 0 : i32
    return %arg0, %c0_i32, %arg1 : i32, i32, i32
  }
}

</mosaic_0001>

<llo_original>
// kernel: tpu_custom_call.1
$region0: #{tpu_custom_call.1}
  #allocation0 [shape = 'u32[]', space=smem, size = 0x4, offset = 0x4, fixed_abs, tag = 'smem constant byte address 0x4 - core index']
  #allocation1 [shape = 'u32[72,128]{1,0:T(1,128)}', space=vmem, size = 0x9000, scoped, tag = 'internal scratch']
  #allocation2 [shape = 'f32[4,10,18]{2,1,0:T(8,128)}', space=vmem, size = 0x8000, scoped, tag = 'scratch operand']
  %s0 = inlined_call_operand.hbm [shape: f32[2,4,16,16], index: 0, kind: input, shape index: {}]
  %s1 = inlined_call_operand.hbm [shape: f32[2,2,8,16], index: 1, kind: input, shape index: {}]
  %s2 = inlined_call_operand.vmem [shape: f32[4,1,9], index: 2, kind: input, shape index: {}]
  %s3 = inlined_call_operand.vmem [shape: f32[8,4], index: 3, kind: input, shape index: {}]
  %s4 = inlined_call_operand.vmem [shape: f32[8,1], index: 4, kind: input, shape index: {}]
  %s5 = inlined_call_operand.hbm [shape: f32[2,8,256], index: 5, kind: output, shape index: {}]
  %s6 = sld [smem:[#allocation0]]
  $region61: #{tpu_custom_call.1} parent=0
    _
  %s8 = ssub.s32 1, %s6
  %s9 = scalar_select 0, %s8, %s6
  $region1: #{tpu_custom_call.1} parent=0
    #allocation3 [shape = 'u8[32768]{0}', space=vmem, size = 0x8000, scoped, tag = 'input window, operand 0']
    #allocation4 [shape = 's32[2]{0}', space=sflag, size = 0x8, scoped, tag = 'scoped memory for tpu_custom_call.1']
    #allocation5 [shape = 's32[2]{0}', space=sflag, size = 0x8, scoped, tag = 'scoped memory for tpu_custom_call.1']
    #allocation6 [shape = 'u8[8192]{0}', space=vmem, size = 0x2000, scoped, tag = 'input window, operand 1']
    #allocation7 [shape = 's32[2]{0}', space=sflag, size = 0x8, scoped, tag = 'scoped memory for tpu_custom_call.1']
    #allocation8 [shape = 'u8[8192]{0}', space=vmem, size = 0x2000, scoped, tag = 'output window, operand 0']
    %10 = vsyncpa [#allocation4], 0
    %s11 = scalar_lea.sflag [#allocation4], 1
    %12 = vsyncpa %s11, 0
    %13 = vsyncpa [#allocation7], 0
    %s14 = scalar_lea.sflag [#allocation7], 1
    %15 = vsyncpa %s14, 0
    %16 = vsyncpa [#allocation5], 0
    %s17 = scalar_lea.sflag [#allocation5], 1
    %18 = vsyncpa %s17, 0
    loop: start=0, step=1, limit=6
    $region2: #{tpu_custom_call.1} parent=1 // loop_pre_header
      _
    $region3: #{tpu_custom_call.1} parent=1 // loop_header
      %s20 = sphi 0, %s24
      %p21 = scmp.ge.s32.totalorder %s20, 6
      %s27 = sphi 0, %s39
      %s28 = sphi 0, %s35
      %s29 = sphi 0, %s27
      %s30 = sphi 0, %s28
      %s31 = sphi 0, %s29
      %s32 = sphi 0, %s30
      %s44 = sphi 0, %s46
      %s47 = sphi 0, %s44
      %s48 = sphi 0, %s47
      %s64 = sphi 0, %s48
      %s72 = sphi 0, %s74
      %s75 = sphi 0, %s72
      %s76 = sphi 0, %s75
      %s92 = sphi 0, %s76
      %s96 = sphi 0, %s96
      %s98 = sphi 0, %s96
      %s99 = sphi 0, %s98
      %s113 = sphi 0, %s99
      %s117 = sphi 0, %s117
      %s119 = sphi 0, %s117
      %s120 = sphi 0, %s119
      %s134 = sphi 0, %s120
      %s138 = sphi 0, %s138
      %s140 = sphi 0, %s138
      %s141 = sphi 0, %s140
      %s155 = sphi 0, %s141
      %s163 = sphi 0, %s165
      %s166 = sphi 0, %s163
      %s167 = sphi 0, %s166
      %s183 = sphi 0, %s167
    $region4: #{tpu_custom_call.1} parent=1 // loop_header_branch
      %23 = sbr.rel (%p21) target = $region8
    $region5: #{tpu_custom_call.1} parent=1 // loop_body
      %s25 = ssub.s32 %s20, 1
      %s26 = ssub.s32 %s20, 2
      %s33 = sadd.s32 1, %s28
      %p34 = scmp.ge.s32.totalorder %s33, 2
      %s35 = scalar_select %p34, 0, %s33
      %s36 = sadd.s32 1, %s27
      %s37 = scalar_select %p34, %s36, %s27
      %p38 = scmp.ge.s32.totalorder %s37, 2
      %s39 = scalar_select %p38, 0, %s37
      %s40 = ssub.s32 %s27, %s39
      %s41 = ssub.s32 %s28, %s35
      %s42 = sor.u32 %s40, %s41
      %p43 = scmp.eq.s32.totalorder %s42, 0
      %s45 = sadd.s32 %s44, 1
      %s46 = scalar_select %p43, %s44, %s45
      %p49 = pneg %p43
      %p50 = scmp.eq.s32.totalorder %s20, 3
      %p51 = por %p49, %p50
      %p52 = scmp.ne.s32.totalorder %s44, %s47
      %p53 = scmp.eq.s32.totalorder %s20, 0
      %p54 = por %p52, %p53
      %p55 = scmp.ne.s32.totalorder %s44, %s47
      %p56 = scmp.eq.s32.totalorder %s25, 3
      %p57 = por %p55, %p56
      %p58 = scmp.ne.s32.totalorder %s47, %s48
      %p59 = scmp.eq.s32.totalorder %s25, 0
      %p60 = por %p58, %p59
      %p61 = scmp.ne.s32.totalorder %s47, %s48
      %p62 = scmp.eq.s32.totalorder %s26, 3
      %p63 = por %p61, %p62
      %p65 = scmp.ne.s32.totalorder %s48, %s64
      %p66 = scmp.eq.s32.totalorder %s26, 0
      %p67 = por %p65, %p66
      %s68 = ssub.s32 %s27, %s39
      %s69 = ssub.s32 %s28, %s35
      %s70 = sor.u32 %s68, %s69
      %p71 = scmp.eq.s32.totalorder %s70, 0
      %s73 = sadd.s32 %s72, 1
      %s74 = scalar_select %p71, %s72, %s73
      %p77 = pneg %p71
      %p78 = scmp.eq.s32.totalorder %s20, 3
      %p79 = por %p77, %p78
      %p80 = scmp.ne.s32.totalorder %s72, %s75
      %p81 = scmp.eq.s32.totalorder %s20, 0
      %p82 = por %p80, %p81
      %p83 = scmp.ne.s32.totalorder %s72, %s75
      %p84 = scmp.eq.s32.totalorder %s25, 3
      %p85 = por %p83, %p84
      %p86 = scmp.ne.s32.totalorder %s75, %s76
      %p87 = scmp.eq.s32.totalorder %s25, 0
      %p88 = por %p86, %p87
      %p89 = scmp.ne.s32.totalorder %s75, %s76
      %p90 = scmp.eq.s32.totalorder %s26, 3
      %p91 = por %p89, %p90
      %p93 = scmp.ne.s32.totalorder %s76, %s92
      %p94 = scmp.eq.s32.totalorder %s26, 0
      %p95 = por %p93, %p94
      %s97 = sadd.s32 %s96, 1
      %p100 = scmp.eq.s32.totalorder %s20, 3
      %p101 = scmp.ne.s32.totalorder %s96, %s98
      %p102 = scmp.eq.s32.totalorder %s20, 0
      %p103 = por %p101, %p102
      %p104 = scmp.ne.s32.totalorder %s96, %s98
      %p105 = scmp.eq.s32.totalorder %s25, 3
      %p106 = por %p104, %p105
      %p107 = scmp.ne.s32.totalorder %s98, %s99
      %p108 = scmp.eq.s32.totalorder %s25, 0
      %p109 = por %p107, %p108
      %p110 = scmp.ne.s32.totalorder %s98, %s99
      %p111 = scmp.eq.s32.totalorder %s26, 3
      %p112 = por %p110, %p111
      %p114 = scmp.ne.s32.totalorder %s99, %s113
      %p115 = scmp.eq.s32.totalorder %s26, 0
      %p116 = por %p114, %p115
      %s118 = sadd.s32 %s117, 1
      %p121 = scmp.eq.s32.totalorder %s20, 3
      %p122 = scmp.ne.s32.totalorder %s117, %s119
      %p123 = scmp.eq.s32.totalorder %s20, 0
      %p124 = por %p122, %p123
      %p125 = scmp.ne.s32.totalorder %s117, %s119
      %p126 = scmp.eq.s32.totalorder %s25, 3
      %p127 = por %p125, %p126
      %p128 = scmp.ne.s32.totalorder %s119, %s120
      %p129 = scmp.eq.s32.totalorder %s25, 0
      %p130 = por %p128, %p129
      %p131 = scmp.ne.s32.totalorder %s119, %s120
      %p132 = scmp.eq.s32.totalorder %s26, 3
      %p133 = por %p131, %p132
      %p135 = scmp.ne.s32.totalorder %s120, %s134
      %p136 = scmp.eq.s32.totalorder %s26, 0
      %p137 = por %p135, %p136
      %s139 = sadd.s32 %s138, 1
      %p142 = scmp.eq.s32.totalorder %s20, 3
      %p143 = scmp.ne.s32.totalorder %s138, %s140
      %p144 = scmp.eq.s32.totalorder %s20, 0
      %p145 = por %p143, %p144
      %p146 = scmp.ne.s32.totalorder %s138, %s140
      %p147 = scmp.eq.s32.totalorder %s25, 3
      %p148 = por %p146, %p147
      %p149 = scmp.ne.s32.totalorder %s140, %s141
      %p150 = scmp.eq.s32.totalorder %s25, 0
      %p151 = por %p149, %p150
      %p152 = scmp.ne.s32.totalorder %s140, %s141
      %p153 = scmp.eq.s32.totalorder %s26, 3
      %p154 = por %p152, %p153
      %p156 = scmp.ne.s32.totalorder %s141, %s155
      %p157 = scmp.eq.s32.totalorder %s26, 0
      %p158 = por %p156, %p157
      %s159 = ssub.s32 %s27, %s39
      %s160 = ssub.s32 %s28, %s35
      %s161 = sor.u32 %s159, %s160
      %p162 = scmp.eq.s32.totalorder %s161, 0
      %s164 = sadd.s32 %s163, 1
      %s165 = scalar_select %p162, %s163, %s164
      %p168 = pneg %p162
      %p169 = scmp.eq.s32.totalorder %s20, 3
      %p170 = por %p168, %p169
      %p171 = scmp.ne.s32.totalorder %s163, %s166
      %p172 = scmp.eq.s32.totalorder %s20, 0
      %p173 = por %p171, %p172
      %p174 = scmp.ne.s32.totalorder %s163, %s166
      %p175 = scmp.eq.s32.totalorder %s25, 3
      %p176 = por %p174, %p175
      %p177 = scmp.ne.s32.totalorder %s166, %s167
      %p178 = scmp.eq.s32.totalorder %s25, 0
      %p179 = por %p177, %p178
      %p180 = scmp.ne.s32.totalorder %s166, %s167
      %p181 = scmp.eq.s32.totalorder %s26, 3
      %p182 = por %p180, %p181
      %p184 = scmp.ne.s32.totalorder %s167, %s183
      %p185 = scmp.eq.s32.totalorder %s26, 0
      %p186 = por %p184, %p185
      %p187 = scmp.le.s32.totalorder 1, %s20
      %p188 = scmp.lt.s32.totalorder %s20, 5
      %p189 = pnand %p187, %p188
      %p190 = pneg %p189
      // Predicated region
      $region9: #{tpu_custom_call.1} parent=5 // pred_check
        _
      $region10: #{tpu_custom_call.1} parent=5 // pred_check_branch
        %192 = sbr.rel (%p189) target = $region12
      $region11: #{tpu_custom_call.1} parent=5 // pred_region
        %s193 = ssub.s32 %s20, 1
        // Predicated region
        $region13: #{tpu_custom_call.1} parent=11 // pred_check
          %p194 = pneg %p109
        $region14: #{tpu_custom_call.1} parent=11 // pred_check_branch
          %196 = sbr.rel (%p194) target = $region16
        $region15: #{tpu_custom_call.1} parent=11 // pred_region
          _
        $region16: #{tpu_custom_call.1} parent=11 // pred_fallthru
          _
        // Predicated region
        $region17: #{tpu_custom_call.1} parent=11 // pred_check
          %p197 = pneg %p130
        $region18: #{tpu_custom_call.1} parent=11 // pred_check_branch
          %199 = sbr.rel (%p197) target = $region20
        $region19: #{tpu_custom_call.1} parent=11 // pred_region
          _
        $region20: #{tpu_custom_call.1} parent=11 // pred_fallthru
          _
        // Predicated region
        $region21: #{tpu_custom_call.1} parent=11 // pred_check
          %p200 = pneg %p151
        $region22: #{tpu_custom_call.1} parent=11 // pred_check_branch
          %202 = sbr.rel (%p200) target = $region24
        $region23: #{tpu_custom_call.1} parent=11 // pred_region
          _
        $region24: #{tpu_custom_call.1} parent=11 // pred_fallthru
          _
      $region12: #{tpu_custom_call.1} parent=5 // pred_fallthru
        _
      %p203 = scmp.lt.s32.totalorder %s20, 4
      // Predicated region
      $region25: #{tpu_custom_call.1} parent=5 // pred_check
        %p204 = pneg %p203
      $region26: #{tpu_custom_call.1} parent=5 // pred_check_branch
        %206 = sbr.rel (%p204) target = $region28
      $region27: #{tpu_custom_call.1} parent=5 // pred_region
        // Predicated region
        $region29: #{tpu_custom_call.1} parent=27 // pred_check
          %p207 = pneg %p54
        $region30: #{tpu_custom_call.1} parent=27 // pred_check_branch
          %209 = sbr.rel (%p207) target = $region32
        $region31: #{tpu_custom_call.1} parent=27 // pred_region
          %s210 = sand.u32 %s44, 1
          %s211 = scalar_lea.sflag [#allocation4], %s210
          %s212 = sand.u32 %s44, 1
          %s213 = smul.addr %s212, 32
          %s214 = scalar_lea.vmem [#allocation3], %s213
          %216 = vsyncadd %s211, 0
          %s217 = smul.addr %s27, 8
          %s218 = sadd.s32 %s28, %s217
          %s219 = smul.addr %s218, 8
          %s220 = scalar_lea.hbm %s0, %s219
          %s221 = sshll.u32 %s220, 4
          %s222 = int_to_ptr.hbm [resolvable:$true] %s221
          %s223 = sshll.u32 %s214, 4
          %s224 = int_to_ptr.vmem [resolvable:$true] %s223
          %229 = dma.hbm_to_vmem [thread:$0]  %s222, 512, %s224, %s211, 256, 128, 8
        $region32: #{tpu_custom_call.1} parent=27 // pred_fallthru
          _
        // Predicated region
        $region33: #{tpu_custom_call.1} parent=27 // pred_check
          %p230 = pneg %p82
        $region34: #{tpu_custom_call.1} parent=27 // pred_check_branch
          %232 = sbr.rel (%p230) target = $region36
        $region35: #{tpu_custom_call.1} parent=27 // pred_region
          %s233 = sand.u32 %s72, 1
          %s234 = scalar_lea.sflag [#allocation7], %s233
          %s235 = sand.u32 %s72, 1
          %s236 = smul.addr %s235, 8
          %s237 = scalar_lea.vmem [#allocation6], %s236
          %239 = vsyncadd %s234, 0
          %s240 = smul.addr %s27, 2
          %s241 = sadd.s32 %s28, %s240
          %s242 = smul.addr %s241, 8
          %s243 = scalar_lea.hbm %s1, %s242
          %s245 = sshll.u32 %s243, 4
          %s246 = int_to_ptr.hbm [resolvable:$true] %s245
          %s247 = sshll.u32 %s237, 4
          %s248 = int_to_ptr.vmem [resolvable:$true] %s247
          %250 = dma.hbm_to_vmem [thread:$0]  %s246, 128, %s248, %s234
        $region36: #{tpu_custom_call.1} parent=27 // pred_fallthru
          _
      $region28: #{tpu_custom_call.1} parent=5 // pred_fallthru
        _
      %p251 = scmp.le.s32.totalorder 1, %s20
      %p252 = scmp.lt.s32.totalorder %s20, 5
      %p253 = pnand %p251, %p252
      %p254 = pneg %p253
      // Predicated region
      $region37: #{tpu_custom_call.1} parent=5 // pred_check
        _
      $region38: #{tpu_custom_call.1} parent=5 // pred_check_branch
        %256 = sbr.rel (%p253) target = $region40
      $region39: #{tpu_custom_call.1} parent=5 // pred_region
        %s257 = ssub.s32 %s20, 1
        %s258 = sand.u32 %s47, 1
        %s259 = scalar_lea.sflag [#allocation4], %s258
        %s260 = sand.u32 %s47, 1
        %s261 = smul.addr %s260, 32
        %s262 = scalar_lea.vmem [#allocation3], %s261
        // Predicated region
        $region41: #{tpu_custom_call.1} parent=39 // pred_check
          %p263 = pneg %p60
        $region42: #{tpu_custom_call.1} parent=39 // pred_check_branch
          %265 = sbr.rel (%p263) target = $region44
        $region43: #{tpu_custom_call.1} parent=39 // pred_region
          %267 = dma.done %s259, 512
        $region44: #{tpu_custom_call.1} parent=39 // pred_fallthru
          _
        %s268 = sand.u32 %s75, 1
        %s269 = scalar_lea.sflag [#allocation7], %s268
        %s270 = sand.u32 %s75, 1
        %s271 = smul.addr %s270, 8
        %s272 = scalar_lea.vmem [#allocation6], %s271
        // Predicated region
        $region45: #{tpu_custom_call.1} parent=39 // pred_check
          %p273 = pneg %p88
        $region46: #{tpu_custom_call.1} parent=39 // pred_check_branch
          %275 = sbr.rel (%p273) target = $region48
        $region47: #{tpu_custom_call.1} parent=39 // pred_region
          %277 = dma.done %s269, 128
        $region48: #{tpu_custom_call.1} parent=39 // pred_fallthru
          _
        %s278 = sand.u32 %s47, 1
        %s279 = scalar_lea.sflag [#allocation4], %s278
        %s280 = sand.u32 %s47, 1
        %s281 = smul.addr %s280, 32
        %s282 = scalar_lea.vmem [#allocation3], %s281
        %p283 = pneg %p60
        %p284 = pneg %p57
        %s285 = sand.u32 %s75, 1
        %s286 = scalar_lea.sflag [#allocation7], %s285
        %s287 = sand.u32 %s75, 1
        %s288 = smul.addr %s287, 8
        %s289 = scalar_lea.vmem [#allocation6], %s288
        %p290 = pneg %p88
        %p291 = pneg %p85
        %p292 = pneg %p109
        %p293 = pneg %p106
        %p294 = pneg %p130
        %p295 = pneg %p127
        %p296 = pneg %p151
        %p297 = pneg %p148
        %p298 = pneg %p179
        %p299 = pneg %p176
        %s300 = sand.u32 %s166, 1
        %s301 = scalar_lea.sflag [#allocation5], %s300
        %s302 = sand.u32 %s166, 1
        %s303 = smul.addr %s302, 8
        %s304 = scalar_lea.vmem [#allocation8], %s303
        %vm305 = vcmask 7168
        %306 = vst.msk [vmem:[#allocation2] sm:$0xff] %vm305, 0.0
        %vm307 = vcmask 1024
        %308 = vst.msk [vmem:[#allocation2 + $0x8] sm:$0x3] %vm307, 0.0
        %309 = vst.msk [vmem:[#allocation2 + $0x10] sm:$0xff] %vm305, 0.0
        %310 = vst.msk [vmem:[#allocation2 + $0x18] sm:$0x3] %vm307, 0.0
        %311 = vst.msk [vmem:[#allocation2 + $0x20] sm:$0xff] %vm305, 0.0
        %312 = vst.msk [vmem:[#allocation2 + $0x28] sm:$0x3] %vm307, 0.0
        %313 = vst.msk [vmem:[#allocation2 + $0x30] sm:$0xff] %vm305, 0.0
        %314 = vst.msk [vmem:[#allocation2 + $0x38] sm:$0x3] %vm307, 0.0
        %vm315 = vcmask 146568
        %316 = vst.msk [vmem:[#allocation2] sm:$0xff] %vm315, 0.0
        %vm317 = vcmask 140424
        %318 = vst.msk [vmem:[#allocation2 + $0x8] sm:$0x3] %vm317, 0.0
        %319 = vst.msk [vmem:[#allocation2 + $0x10] sm:$0xff] %vm315, 0.0
        %320 = vst.msk [vmem:[#allocation2 + $0x18] sm:$0x3] %vm317, 0.0
        %321 = vst.msk [vmem:[#allocation2 + $0x20] sm:$0xff] %vm315, 0.0
        %322 = vst.msk [vmem:[#allocation2 + $0x28] sm:$0x3] %vm317, 0.0
        %323 = vst.msk [vmem:[#allocation2 + $0x30] sm:$0xff] %vm315, 0.0
        %324 = vst.msk [vmem:[#allocation2 + $0x38] sm:$0x3] %vm317, 0.0
        %v325 = vld [vmem:[%s272] sm:$0xf]
        %v327 = vrot.slane %v325, 1
        %v328 = vrot.slane %v325, 2
        %v329 = vrot.slane %v325, 3
        %v330 = vld [vmem:[%s272 + $0x4] sm:$0xf]
        %v332 = vrot.slane %v330, 1
        %v333 = vrot.slane %v330, 2
        %v334 = vrot.slane %v330, 3
        %v335 = vperm.slane %v325, 0
        %v336 = vperm.slane %v327, 0
        %v337 = vperm.slane %v328, 0
        %v338 = vperm.slane %v329, 0
        %339 = vrot.lane.b32.xlu0 %v335, 1
        %v340 = vpop.permute.xlu0 %339
        %341 = vrot.lane.b32.xlu0 %v336, 1
        %v342 = vpop.permute.xlu0 %341
        %343 = vrot.lane.b32.xlu0 %v337, 1
        %v344 = vpop.permute.xlu0 %343
        %345 = vrot.lane.b32.xlu0 %v338, 1
        %v346 = vpop.permute.xlu0 %345
        %vm351 = vcmask 131080
        %352 = vst.msk [vmem:[#allocation2] sm:$0x1] %vm351, %v340
        %353 = vst.msk [vmem:[#allocation2 + $0x10] sm:$0x1] %vm351, %v342
        %354 = vst.msk [vmem:[#allocation2 + $0x20] sm:$0x1] %vm351, %v344
        %355 = vst.msk [vmem:[#allocation2 + $0x30] sm:$0x1] %vm351, %v346
        %v356 = vperm.slane %v330, 0
        %v357 = vperm.slane %v332, 0
        %v358 = vperm.slane %v333, 0
        %v359 = vperm.slane %v334, 0
        %360 = vrot.lane.b32.xlu0 %v356, 1
        %v361 = vpop.permute.xlu0 %360
        %362 = vrot.lane.b32.xlu0 %v357, 1
        %v363 = vpop.permute.xlu0 %362
        %364 = vrot.lane.b32.xlu0 %v358, 1
        %v365 = vpop.permute.xlu0 %364
        %366 = vrot.lane.b32.xlu0 %v359, 1
        %v367 = vpop.permute.xlu0 %366
        %372 = vst.msk [vmem:[#allocation2 + $0x9] sm:$0x1] %vm351, %v361
        %373 = vst.msk [vmem:[#allocation2 + $0x19] sm:$0x1] %vm351, %v363
        %374 = vst.msk [vmem:[#allocation2 + $0x29] sm:$0x1] %vm351, %v365
        %375 = vst.msk [vmem:[#allocation2 + $0x39] sm:$0x1] %vm351, %v367
        %v376 = vld [vmem:[%s262] sm:$0xff]
        %v377 = vld [vmem:[%s262 + $0x8] sm:$0xff]
        %v378 = vld [vmem:[%s262 + $0x10] sm:$0xff]
        %v379 = vld [vmem:[%s262 + $0x18] sm:$0xff]
        %384 = vrot.lane.b32.xlu0 %v376, 1
        %v385 = vpop.permute.xlu0 %384
        %386 = vrot.lane.b32.xlu0 %v377, 1
        %v387 = vpop.permute.xlu0 %386
        %388 = vrot.lane.b32.xlu0 %v378, 1
        %v389 = vpop.permute.xlu0 %388
        %390 = vrot.lane.b32.xlu0 %v379, 1
        %v391 = vpop.permute.xlu0 %390
        %vm396 = vcmask 138248
        %397 = vst.msk [vmem:[#allocation2 + $0x1] sm:$0xff] %vm396, %v385
        %398 = vst.msk [vmem:[#allocation2 + $0x11] sm:$0xff] %vm396, %v387
        %399 = vst.msk [vmem:[#allocation2 + $0x21] sm:$0xff] %vm396, %v389
        %400 = vst.msk [vmem:[#allocation2 + $0x31] sm:$0xff] %vm396, %v391
        %v401 = vld [vmem:[#allocation2] sm:$0xff]
        %v402 = vld [vmem:[#allocation2 + $0x8] sm:$0x3]
        %v403 = vld [vmem:[#allocation2 + $0x10] sm:$0xff]
        %v404 = vld [vmem:[#allocation2 + $0x18] sm:$0x3]
        %v405 = vld [vmem:[#allocation2 + $0x20] sm:$0xff]
        %v406 = vld [vmem:[#allocation2 + $0x28] sm:$0x3]
        %v407 = vld [vmem:[#allocation2 + $0x30] sm:$0xff]
        %v408 = vld [vmem:[#allocation2 + $0x38] sm:$0x3]
        %v409 = vld [vmem:[%s2] sm:$0x1]
        %v410 = vld [vmem:[%s2 + $0x1] sm:$0x1]
        %v411 = vld [vmem:[%s2 + $0x2] sm:$0x1]
        %v412 = vld [vmem:[%s2 + $0x3] sm:$0x1]
        %v417 = vperm.slane %v409, 0
        %v418 = vperm.slane %v410, 0
        %v419 = vperm.slane %v411, 0
        %v420 = vperm.slane %v412, 0
        %421 = vset.pattern.permute.xlu0 0
        %422 = vperm.xlu0 %421, %v417
        %v423 = vpop.permute.xlu0 %422
        %425 = vset.pattern.permute.xlu0 0
        %426 = vperm.xlu0 %425, %v418
        %v427 = vpop.permute.xlu0 %426
        %429 = vset.pattern.permute.xlu0 0
        %430 = vperm.xlu0 %429, %v419
        %v431 = vpop.permute.xlu0 %430
        %433 = vset.pattern.permute.xlu0 0
        %434 = vperm.xlu0 %433, %v420
        %v435 = vpop.permute.xlu0 %434
        %v437 = vmul.f32 %v423, %v401
        %v438 = vmul.f32 %v427, %v403
        %v439 = vmul.f32 %v431, %v405
        %v440 = vmul.f32 %v435, %v407
        %441 = vset.pattern.permute.xlu0 1
        %442 = vperm.xlu0 %441, %v417
        %v443 = vpop.permute.xlu0 %442
        %445 = vset.pattern.permute.xlu0 1
        %446 = vperm.xlu0 %445, %v418
        %v447 = vpop.permute.xlu0 %446
        %449 = vset.pattern.permute.xlu0 1
        %450 = vperm.xlu0 %449, %v419
        %v451 = vpop.permute.xlu0 %450
        %453 = vset.pattern.permute.xlu0 1
        %454 = vperm.xlu0 %453, %v420
        %v455 = vpop.permute.xlu0 %454
        %v457 = vmul.f32 %v443, %v401
        %v458 = vmul.f32 %v447, %v403
        %v459 = vmul.f32 %v451, %v405
        %v460 = vmul.f32 %v455, %v407
        %465 = vrot.lane.b32.xlu0 %v457, 127
        %v466 = vpop.permute.xlu0 %465
        %467 = vrot.lane.b32.xlu0 %v458, 127
        %v468 = vpop.permute.xlu0 %467
        %469 = vrot.lane.b32.xlu0 %v459, 127
        %v470 = vpop.permute.xlu0 %469
        %471 = vrot.lane.b32.xlu0 %v460, 127
        %v472 = vpop.permute.xlu0 %471
        %v477 = vadd.f32 %v437, %v466
        %v478 = vadd.f32 %v438, %v468
        %v479 = vadd.f32 %v439, %v470
        %v480 = vadd.f32 %v440, %v472
        %481 = vset.pattern.permute.xlu0 2
        %482 = vperm.xlu0 %481, %v417
        %v483 = vpop.permute.xlu0 %482
        %485 = vset.pattern.permute.xlu0 2
        %486 = vperm.xlu0 %485, %v418
        %v487 = vpop.permute.xlu0 %486
        %489 = vset.pattern.permute.xlu0 2
        %490 = vperm.xlu0 %489, %v419
        %v491 = vpop.permute.xlu0 %490
        %493 = vset.pattern.permute.xlu0 2
        %494 = vperm.xlu0 %493, %v420
        %v495 = vpop.permute.xlu0 %494
        %v497 = vmul.f32 %v483, %v401
        %v498 = vmul.f32 %v487, %v403
        %v499 = vmul.f32 %v491, %v405
        %v500 = vmul.f32 %v495, %v407
        %505 = vrot.lane.b32.xlu0 %v497, 126
        %v506 = vpop.permute.xlu0 %505
        %507 = vrot.lane.b32.xlu0 %v498, 126
        %v508 = vpop.permute.xlu0 %507
        %509 = vrot.lane.b32.xlu0 %v499, 126
        %v510 = vpop.permute.xlu0 %509
        %511 = vrot.lane.b32.xlu0 %v500, 126
        %v512 = vpop.permute.xlu0 %511
        %v517 = vadd.f32 %v477, %v506
        %v518 = vadd.f32 %v478, %v508
        %v519 = vadd.f32 %v479, %v510
        %v520 = vadd.f32 %v480, %v512
        %521 = vset.pattern.permute.xlu0 3
        %522 = vperm.xlu0 %521, %v417
        %v523 = vpop.permute.xlu0 %522
        %525 = vset.pattern.permute.xlu0 3
        %526 = vperm.xlu0 %525, %v418
        %v527 = vpop.permute.xlu0 %526
        %529 = vset.pattern.permute.xlu0 3
        %530 = vperm.xlu0 %529, %v419
        %v531 = vpop.permute.xlu0 %530
        %533 = vset.pattern.permute.xlu0 3
        %534 = vperm.xlu0 %533, %v420
        %v535 = vpop.permute.xlu0 %534
        %v537 = vmul.f32 %v523, %v401
        %v538 = vmul.f32 %v523, %v402
        %v539 = vmul.f32 %v527, %v403
        %v540 = vmul.f32 %v527, %v404
        %v541 = vmul.f32 %v531, %v405
        %v542 = vmul.f32 %v531, %v406
        %v543 = vmul.f32 %v535, %v407
        %v544 = vmul.f32 %v535, %v408
        %vm553 = vcmask 1046528
        %v554 = vrot.slane %v537, 1
        %v555 = vrot.slane %v538, 1
        %v556 = vsel %vm553, %v554, %v555
        %v557 = vrot.slane %v539, 1
        %v558 = vrot.slane %v540, 1
        %v559 = vsel %vm553, %v557, %v558
        %v560 = vrot.slane %v541, 1
        %v561 = vrot.slane %v542, 1
        %v562 = vsel %vm553, %v560, %v561
        %v563 = vrot.slane %v543, 1
        %v564 = vrot.slane %v544, 1
        %v565 = vsel %vm553, %v563, %v564
        %v570 = vadd.f32 %v517, %v556
        %v571 = vadd.f32 %v518, %v559
        %v572 = vadd.f32 %v519, %v562
        %v573 = vadd.f32 %v520, %v565
        %574 = vset.pattern.permute.xlu0 4
        %575 = vperm.xlu0 %574, %v417
        %v576 = vpop.permute.xlu0 %575
        %578 = vset.pattern.permute.xlu0 4
        %579 = vperm.xlu0 %578, %v418
        %v580 = vpop.permute.xlu0 %579
        %582 = vset.pattern.permute.xlu0 4
        %583 = vperm.xlu0 %582, %v419
        %v584 = vpop.permute.xlu0 %583
        %586 = vset.pattern.permute.xlu0 4
        %587 = vperm.xlu0 %586, %v420
        %v588 = vpop.permute.xlu0 %587
        %v590 = vmul.f32 %v576, %v401
        %v591 = vmul.f32 %v576, %v402
        %v592 = vmul.f32 %v580, %v403
        %v593 = vmul.f32 %v580, %v404
        %v594 = vmul.f32 %v584, %v405
        %v595 = vmul.f32 %v584, %v406
        %v596 = vmul.f32 %v588, %v407
        %v597 = vmul.f32 %v588, %v408
        %v606 = vrot.slane %v590, 1
        %v607 = vrot.slane %v591, 1
        %v608 = vsel %vm553, %v606, %v607
        %v609 = vrot.slane %v592, 1
        %v610 = vrot.slane %v593, 1
        %v611 = vsel %vm553, %v609, %v610
        %v612 = vrot.slane %v594, 1
        %v613 = vrot.slane %v595, 1
        %v614 = vsel %vm553, %v612, %v613
        %v615 = vrot.slane %v596, 1
        %v616 = vrot.slane %v597, 1
        %v617 = vsel %vm553, %v615, %v616
        %618 = vrot.lane.b32.xlu0 %v608, 127
        %v619 = vpop.permute.xlu0 %618
        %620 = vrot.lane.b32.xlu0 %v611, 127
        %v621 = vpop.permute.xlu0 %620
        %622 = vrot.lane.b32.xlu0 %v614, 127
        %v623 = vpop.permute.xlu0 %622
        %624 = vrot.lane.b32.xlu0 %v617, 127
        %v625 = vpop.permute.xlu0 %624
        %v630 = vadd.f32 %v570, %v619
        %v631 = vadd.f32 %v571, %v621
        %v632 = vadd.f32 %v572, %v623
        %v633 = vadd.f32 %v573, %v625
        %634 = vset.pattern.permute.xlu0 5
        %635 = vperm.xlu0 %634, %v417
        %v636 = vpop.permute.xlu0 %635
        %638 = vset.pattern.permute.xlu0 5
        %639 = vperm.xlu0 %638, %v418
        %v640 = vpop.permute.xlu0 %639
        %642 = vset.pattern.permute.xlu0 5
        %643 = vperm.xlu0 %642, %v419
        %v644 = vpop.permute.xlu0 %643
        %646 = vset.pattern.permute.xlu0 5
        %647 = vperm.xlu0 %646, %v420
        %v648 = vpop.permute.xlu0 %647
        %v650 = vmul.f32 %v636, %v401
        %v651 = vmul.f32 %v636, %v402
        %v652 = vmul.f32 %v640, %v403
        %v653 = vmul.f32 %v640, %v404
        %v654 = vmul.f32 %v644, %v405
        %v655 = vmul.f32 %v644, %v406
        %v656 = vmul.f32 %v648, %v407
        %v657 = vmul.f32 %v648, %v408
        %v666 = vrot.slane %v650, 1
        %v667 = vrot.slane %v651, 1
        %v668 = vsel %vm553, %v666, %v667
        %v669 = vrot.slane %v652, 1
        %v670 = vrot.slane %v653, 1
        %v671 = vsel %vm553, %v669, %v670
        %v672 = vrot.slane %v654, 1
        %v673 = vrot.slane %v655, 1
        %v674 = vsel %vm553, %v672, %v673
        %v675 = vrot.slane %v656, 1
        %v676 = vrot.slane %v657, 1
        %v677 = vsel %vm553, %v675, %v676
        %678 = vrot.lane.b32.xlu0 %v668, 126
        %v679 = vpop.permute.xlu0 %678
        %680 = vrot.lane.b32.xlu0 %v671, 126
        %v681 = vpop.permute.xlu0 %680
        %682 = vrot.lane.b32.xlu0 %v674, 126
        %v683 = vpop.permute.xlu0 %682
        %684 = vrot.lane.b32.xlu0 %v677, 126
        %v685 = vpop.permute.xlu0 %684
        %v690 = vadd.f32 %v630, %v679
        %v691 = vadd.f32 %v631, %v681
        %v692 = vadd.f32 %v632, %v683
        %v693 = vadd.f32 %v633, %v685
        %694 = vset.pattern.permute.xlu0 6
        %695 = vperm.xlu0 %694, %v417
        %v696 = vpop.permute.xlu0 %695
        %698 = vset.pattern.permute.xlu0 6
        %699 = vperm.xlu0 %698, %v418
        %v700 = vpop.permute.xlu0 %699
        %702 = vset.pattern.permute.xlu0 6
        %703 = vperm.xlu0 %702, %v419
        %v704 = vpop.permute.xlu0 %703
        %706 = vset.pattern.permute.xlu0 6
        %707 = vperm.xlu0 %706, %v420
        %v708 = vpop.permute.xlu0 %707
        %v710 = vmul.f32 %v696, %v401
        %v711 = vmul.f32 %v696, %v402
        %v712 = vmul.f32 %v700, %v403
        %v713 = vmul.f32 %v700, %v404
        %v714 = vmul.f32 %v704, %v405
        %v715 = vmul.f32 %v704, %v406
        %v716 = vmul.f32 %v708, %v407
        %v717 = vmul.f32 %v708, %v408
        %vm726 = vcmask 1045504
        %v727 = vrot.slane %v710, 2
        %v728 = vrot.slane %v711, 2
        %v729 = vsel %vm726, %v727, %v728
        %v730 = vrot.slane %v712, 2
        %v731 = vrot.slane %v713, 2
        %v732 = vsel %vm726, %v730, %v731
        %v733 = vrot.slane %v714, 2
        %v734 = vrot.slane %v715, 2
        %v735 = vsel %vm726, %v733, %v734
        %v736 = vrot.slane %v716, 2
        %v737 = vrot.slane %v717, 2
        %v738 = vsel %vm726, %v736, %v737
        %v743 = vadd.f32 %v690, %v729
        %v744 = vadd.f32 %v691, %v732
        %v745 = vadd.f32 %v692, %v735
        %v746 = vadd.f32 %v693, %v738
        %747 = vset.pattern.permute.xlu0 7
        %748 = vperm.xlu0 %747, %v417
        %v749 = vpop.permute.xlu0 %748
        %751 = vset.pattern.permute.xlu0 7
        %752 = vperm.xlu0 %751, %v418
        %v753 = vpop.permute.xlu0 %752
        %755 = vset.pattern.permute.xlu0 7
        %756 = vperm.xlu0 %755, %v419
        %v757 = vpop.permute.xlu0 %756
        %759 = vset.pattern.permute.xlu0 7
        %760 = vperm.xlu0 %759, %v420
        %v761 = vpop.permute.xlu0 %760
        %v763 = vmul.f32 %v749, %v401
        %v764 = vmul.f32 %v749, %v402
        %v765 = vmul.f32 %v753, %v403
        %v766 = vmul.f32 %v753, %v404
        %v767 = vmul.f32 %v757, %v405
        %v768 = vmul.f32 %v757, %v406
        %v769 = vmul.f32 %v761, %v407
        %v770 = vmul.f32 %v761, %v408
        %v779 = vrot.slane %v763, 2
        %v780 = vrot.slane %v764, 2
        %v781 = vsel %vm726, %v779, %v780
        %v782 = vrot.slane %v765, 2
        %v783 = vrot.slane %v766, 2
        %v784 = vsel %vm726, %v782, %v783
        %v785 = vrot.slane %v767, 2
        %v786 = vrot.slane %v768, 2
        %v787 = vsel %vm726, %v785, %v786
        %v788 = vrot.slane %v769, 2
        %v789 = vrot.slane %v770, 2
        %v790 = vsel %vm726, %v788, %v789
        %791 = vrot.lane.b32.xlu0 %v781, 127
        %v792 = vpop.permute.xlu0 %791
        %793 = vrot.lane.b32.xlu0 %v784, 127
        %v794 = vpop.permute.xlu0 %793
        %795 = vrot.lane.b32.xlu0 %v787, 127
        %v796 = vpop.permute.xlu0 %795
        %797 = vrot.lane.b32.xlu0 %v790, 127
        %v798 = vpop.permute.xlu0 %797
        %v803 = vadd.f32 %v743, %v792
        %v804 = vadd.f32 %v744, %v794
        %v805 = vadd.f32 %v745, %v796
        %v806 = vadd.f32 %v746, %v798
        %807 = vset.pattern.permute.xlu0 8
        %808 = vperm.xlu0 %807, %v417
        %v809 = vpop.permute.xlu0 %808
        %811 = vset.pattern.permute.xlu0 8
        %812 = vperm.xlu0 %811, %v418
        %v813 = vpop.permute.xlu0 %812
        %815 = vset.pattern.permute.xlu0 8
        %816 = vperm.xlu0 %815, %v419
        %v817 = vpop.permute.xlu0 %816
        %819 = vset.pattern.permute.xlu0 8
        %820 = vperm.xlu0 %819, %v420
        %v821 = vpop.permute.xlu0 %820
        %v823 = vmul.f32 %v809, %v401
        %v824 = vmul.f32 %v809, %v402
        %v825 = vmul.f32 %v813, %v403
        %v826 = vmul.f32 %v813, %v404
        %v827 = vmul.f32 %v817, %v405
        %v828 = vmul.f32 %v817, %v406
        %v829 = vmul.f32 %v821, %v407
        %v830 = vmul.f32 %v821, %v408
        %v839 = vrot.slane %v823, 2
        %v840 = vrot.slane %v824, 2
        %v841 = vsel %vm726, %v839, %v840
        %v842 = vrot.slane %v825, 2
        %v843 = vrot.slane %v826, 2
        %v844 = vsel %vm726, %v842, %v843
        %v845 = vrot.slane %v827, 2
        %v846 = vrot.slane %v828, 2
        %v847 = vsel %vm726, %v845, %v846
        %v848 = vrot.slane %v829, 2
        %v849 = vrot.slane %v830, 2
        %v850 = vsel %vm726, %v848, %v849
        %851 = vrot.lane.b32.xlu0 %v841, 126
        %v852 = vpop.permute.xlu0 %851
        %853 = vrot.lane.b32.xlu0 %v844, 126
        %v854 = vpop.permute.xlu0 %853
        %855 = vrot.lane.b32.xlu0 %v847, 126
        %v856 = vpop.permute.xlu0 %855
        %857 = vrot.lane.b32.xlu0 %v850, 126
        %v858 = vpop.permute.xlu0 %857
        %v863 = vadd.f32 %v803, %v852
        %v864 = vadd.f32 %v804, %v854
        %v865 = vadd.f32 %v805, %v856
        %v866 = vadd.f32 %v806, %v858
        %v867 = vld [vmem:[%s3] sm:$0xff]
        %v868 = vrot.slane %v865, 4
        %vm869 = vcmask 1047556
        %v870 = vsel %vm869, %v868, %v863
        %v871 = vrot.slane %v863, 4
        %v872 = vsel %vm869, %v865, %v871
        %v874 = vunpack.c.l.s4 1983009808
        %v875 = vunpack.c.0.s8 %v874
        %v876 = vperm.slane %v870, %v875
        %v878 = vunpack.c.l.s4 1983009808
        %v879 = vunpack.c.0.s8 %v878
        %v880 = vperm.slane %v872, %v879
        %v881 = vrot.slane %v866, 4
        %v882 = vsel %vm869, %v881, %v864
        %v883 = vrot.slane %v864, 4
        %v884 = vsel %vm869, %v866, %v883
        %v886 = vunpack.c.l.s4 1983009808
        %v887 = vunpack.c.0.s8 %v886
        %v888 = vperm.slane %v882, %v887
        %v890 = vunpack.c.l.s4 1983009808
        %v891 = vunpack.c.0.s8 %v890
        %v892 = vperm.slane %v884, %v891
        %v893 = vrot.slane %v888, 4
        %v894 = vsel %vm869, %v893, %v876
        %v895 = vrot.slane %v876, 4
        %v896 = vsel %vm869, %v888, %v895
        %v898 = vunpack.c.l.s4 1934713408
        %v899 = vunpack.c.0.s8 %v898
        %v900 = vperm.slane %v894, %v899
        %v902 = vunpack.c.l.s4 1934713408
        %v903 = vunpack.c.0.s8 %v902
        %v904 = vperm.slane %v896, %v903
        %v905 = vrot.slane %v892, 4
        %v906 = vsel %vm869, %v905, %v880
        %v907 = vrot.slane %v880, 4
        %v908 = vsel %vm869, %v892, %v907
        %v910 = vunpack.c.l.s4 1934713408
        %v911 = vunpack.c.0.s8 %v910
        %v912 = vperm.slane %v906, %v911
        %v914 = vunpack.c.l.s4 1934713408
        %v915 = vunpack.c.0.s8 %v914
        %v916 = vperm.slane %v908, %v915
        %v917 = vrot.slane %v900, 4
        %v918 = vsel %vm869, 0.0, %v917
        %v919 = vrot.slane %v904, 4
        %v920 = vsel %vm869, 0.0, %v919
        %v921 = vrot.slane %v912, 4
        %v922 = vsel %vm869, 0.0, %v921
        %v923 = vrot.slane %v916, 4
        %v924 = vsel %vm869, 0.0, %v923
        %926 = vrot.lane.b32.xlu0 %v918, 16
        %v927 = vpop.permute.xlu0 %926
        %930 = vrot.lane.b32.xlu0 %v904, 32
        %v931 = vpop.permute.xlu0 %930
        %934 = vrot.lane.b32.xlu0 %v920, 48
        %v935 = vpop.permute.xlu0 %934
        %938 = vrot.lane.b32.xlu0 %v912, 64
        %v939 = vpop.permute.xlu0 %938
        %942 = vrot.lane.b32.xlu0 %v922, 80
        %v943 = vpop.permute.xlu0 %942
        %946 = vrot.lane.b32.xlu0 %v916, 96
        %v947 = vpop.permute.xlu0 %946
        %950 = vrot.lane.b32.xlu0 %v924, 112
        %v951 = vpop.permute.xlu0 %950
        %vm953 = vcmask 130048
        %v954 = vsel %vm953, %v900, %v927
        %vm955 = vcmask 261120
        %v956 = vsel %vm955, %v954, %v931
        %vm957 = vcmask 392192
        %v958 = vsel %vm957, %v956, %v935
        %vm959 = vcmask 523264
        %v960 = vsel %vm959, %v958, %v939
        %vm961 = vcmask 654336
        %v962 = vsel %vm961, %v960, %v943
        %vm963 = vcmask 785408
        %v964 = vsel %vm963, %v962, %v947
        %vm965 = vcmask 916480
        %v966 = vsel %vm965, %v964, %v951
        %v967 = vld [vmem:[%s4] sm:$0xff]
        %969 = vset.pattern.permute.xlu0 0
        %970 = vperm.xlu0 %969, %v967
        %v971 = vpop.permute.xlu0 %970
        %vm973 = vcmask 31744
        %v975 = vsel %vm973, %v867, 0
        %vm977 = vcmask 1043456
        %v979 = vsel %vm977, %v966, 0
        %981 = vmatpush.msra.mxu0 0.0
        %982 = vmatpush.msra.mxu0 0.0
        %983 = vmatpush.msra.mxu0 0.0
        %984 = vmatpush.msra.mxu0 0.0
        %985 = vmatpush.msra.mxu0 0.0
        %986 = vmatpush.msra.mxu0 0.0
        %987 = vmatpush.msra.mxu0 0.0
        %988 = vmatpush.msra.mxu0 0.0
        %989 = vmatpush.msra.mxu0 0.0
        %990 = vmatpush.msra.mxu0 0.0
        %991 = vmatpush.msra.mxu0 0.0
        %992 = vmatpush.msra.mxu0 0.0
        %993 = vmatpush.msra.mxu0 0.0
        %994 = vmatpush.msra.mxu0 0.0
        %995 = vmatpush.msra.mxu0 0.0
        %996 = vmatpush.msra.mxu0 %v979
        %997 = vmatmul.f32.gmra.mxu0 %v975
        %v998 = vpop.f32.mrf.mxu0
        %v999 = vadd.f32 %v971, %v998
        %1000 = vdwg.mxu0
        %1001 = vst [vmem:[%s304] sm:$0xff] %v999
        %s1002 = sand.u32 %s166, 1
        %s1003 = scalar_lea.sflag [#allocation5], %s1002
        %s1004 = sand.u32 %s166, 1
        %s1005 = smul.addr %s1004, 8
        %s1006 = scalar_lea.vmem [#allocation8], %s1005
        // Predicated region
        $region49: #{tpu_custom_call.1} parent=39 // pred_check
          %p1007 = pneg %p176
        $region50: #{tpu_custom_call.1} parent=39 // pred_check_branch
          %1009 = sbr.rel (%p1007) target = $region52
        $region51: #{tpu_custom_call.1} parent=39 // pred_region
          %1011 = vsyncadd %s1003, 0
          %s1012 = smul.addr %s29, 2
          %s1013 = sadd.s32 %s30, %s1012
          %s1014 = smul.addr %s1013, 8
          %s1015 = scalar_lea.hbm %s5, %s1014
          %s1017 = sshll.u32 %s1006, 4
          %s1018 = int_to_ptr.vmem [resolvable:$true] %s1017
          %s1019 = sshll.u32 %s1015, 4
          %s1020 = int_to_ptr.hbm [resolvable:$true] %s1019
          %1022 = dma.vmem_to_hbm [thread:$0]  %s1018, 128, %s1020, %s1003
        $region52: #{tpu_custom_call.1} parent=39 // pred_fallthru
          _
      $region40: #{tpu_custom_call.1} parent=5 // pred_fallthru
        _
      %p1023 = scmp.le.s32.totalorder 2, %s20
      // Predicated region
      $region53: #{tpu_custom_call.1} parent=5 // pred_check
        %p1024 = pneg %p1023
      $region54: #{tpu_custom_call.1} parent=5 // pred_check_branch
        %1026 = sbr.rel (%p1024) target = $region56
      $region55: #{tpu_custom_call.1} parent=5 // pred_region
        %s1027 = ssub.s32 %s20, 2
        // Predicated region
        $region57: #{tpu_custom_call.1} parent=55 // pred_check
          %p1028 = pneg %p182
        $region58: #{tpu_custom_call.1} parent=55 // pred_check_branch
          %1030 = sbr.rel (%p1028) target = $region60
        $region59: #{tpu_custom_call.1} parent=55 // pred_region
          %s1031 = sand.u32 %s167, 1
          %s1032 = scalar_lea.sflag [#allocation5], %s1031
          %s1033 = sand.u32 %s167, 1
          %s1034 = smul.addr %s1033, 8
          %s1035 = scalar_lea.vmem [#allocation8], %s1034
          %1037 = dma.done %s1032, 128
        $region60: #{tpu_custom_call.1} parent=55 // pred_fallthru
          _
      $region56: #{tpu_custom_call.1} parent=5 // pred_fallthru
        _
    $region6: #{tpu_custom_call.1} parent=1 // loop_footer
      %s24 = sadd.s32 1, %s20
    $region7: #{tpu_custom_call.1} parent=1 // loop_footer_branch
      %19 = sbr.rel target = $region3
    $region8: #{tpu_custom_call.1} parent=1 // loop_exit
      _
    %1038 = vsyncpa [#allocation4], 1
    %s1039 = scalar_lea.sflag [#allocation4], 1
    %1040 = vsyncpa %s1039, 1
    %1041 = vsyncpa [#allocation7], 1
    %s1042 = scalar_lea.sflag [#allocation7], 1
    %1043 = vsyncpa %s1042, 1
    %1044 = vsyncpa [#allocation5], 1
    %s1045 = scalar_lea.sflag [#allocation5], 1
    %1046 = vsyncpa %s1045, 1

</llo_original>
